<compile_context>
chip_gen: v6e
topology: v6e:2x2x1
jax: 0.10.0
libtpu: 0.0.40
codegen_flags: <defaults>
</compile_context>

<pallas_src>
import functools

import jax
import jax.numpy as jnp
from jax.experimental import pallas as pl
from jax.experimental.pallas import tpu as pltpu


def _folded_linear_kernel(x_ref, w_ref, b_ref, o_ref):
    # x_ref: (tile_r, F*dim_pos)  w_ref: (F*dim_pos, F*embed_dim)  b_ref: (1, F*embed_dim)
    acc = jnp.dot(x_ref[...], w_ref[...], preferred_element_type=jnp.float32)
    o_ref[...] = (acc + b_ref[...]).astype(o_ref.dtype)


@functools.partial(jax.jit, static_argnames=("tile_r",))
def type_model_linear(edge_type, w_t, b, *, tile_r=1024):
    """edge_attr = edge_type @ w_t + b.

    edge_type: (E, dim_pos) f32
    w_t:       (dim_pos, embed_dim) f32   (torch weight, transposed)
    b:         (embed_dim,) f32
    """
    E, dim_pos = edge_type.shape
    embed_dim = w_t.shape[1]
    dtype = edge_type.dtype

    # Fold F edges per row so the lane (last) axis is ~128 wide on both the
    # input (F*dim_pos) and the output (F*embed_dim).
    F = max(1, 128 // max(dim_pos, embed_dim))

    # Pad edge count only up to a multiple of F (<= F-1 rows, and only when
    # needed).  Per-tile raggedness is handled inside the grid via pl.cdiv.
    E_pad = ((E + F - 1) // F) * F
    if E_pad != E:
        edge_type = jnp.pad(edge_type, ((0, E_pad - E), (0, 0)))
    R = E_pad // F

    # (E_pad, dim_pos) -> (R, F*dim_pos): row-major, contiguous, free.
    x_fold = edge_type.reshape(R, F * dim_pos)

    # Block-diagonal weight: out_fold[r, f*ed:(f+1)*ed] = edge_{F*r+f} @ w_t + b.
    w_blk = jnp.kron(jnp.eye(F, dtype=w_t.dtype), w_t)   # (F*dim_pos, F*embed_dim)
    b_tiled = jnp.tile(b, F)[None, :]                    # (1, F*embed_dim)

    # Keep the block a multiple of 8 rows; clamp so tiny inputs allocate tiny tiles.
    tile_r_eff = min(tile_r, max(8, ((R + 7) // 8) * 8))
    grid = (pl.cdiv(R, tile_r_eff),)

    itemsize = jnp.dtype(dtype).itemsize
    cost = pl.CostEstimate(
        flops=2 * E_pad * dim_pos * embed_dim,
        transcendentals=0,
        bytes_accessed=(E_pad * dim_pos + E_pad * embed_dim) * itemsize
        + (w_blk.size + b_tiled.size) * itemsize,
    )

    out_fold = pl.pallas_call(
        _folded_linear_kernel,
        out_shape=jax.ShapeDtypeStruct((R, F * embed_dim), dtype),
        grid_spec=pltpu.PrefetchScalarGridSpec(
            num_scalar_prefetch=0,
            grid=grid,
            in_specs=[
                pl.BlockSpec((tile_r_eff, F * dim_pos), lambda i: (i, 0)),
                pl.BlockSpec((F * dim_pos, F * embed_dim), lambda i: (0, 0)),
                pl.BlockSpec((1, F * embed_dim), lambda i: (0, 0)),
            ],
            out_specs=pl.BlockSpec((tile_r_eff, F * embed_dim), lambda i: (i, 0)),
        ),
        compiler_params=pltpu.CompilerParams(
            dimension_semantics=("parallel",),
        ),
        cost_estimate=cost,
    )(x_fold, w_blk, b_tiled)

    # (R, F*embed_dim) -> (E_pad, embed_dim): free reshape; drop padded rows.
    return out_fold.reshape(E_pad, embed_dim)[:E]


class SinePosEbdEdgeEncoderPallas:
    """Deterministically-initialized JAX/Pallas port of SinePosEbdEdgeEncoder."""

    def __init__(self, embed_dim, dim_edge, dim_pos, key):
        k0, k1, k2, k3 = jax.random.split(key, 4)
        # self.model = nn.Linear(dim_edge * dim_pos, embed_dim)  (unused in forward)
        fan_in_m = dim_edge * dim_pos
        bound_m = 1.0 / jnp.sqrt(fan_in_m)
        self.model_w = jax.random.uniform(
            k0, (embed_dim, fan_in_m), jnp.float32, -bound_m, bound_m)
        self.model_b = jax.random.uniform(
            k1, (embed_dim,), jnp.float32, -bound_m, bound_m)
        # self.type_model = nn.Linear(dim_pos, embed_dim)
        bound_t = 1.0 / jnp.sqrt(dim_pos)
        self.type_w = jax.random.uniform(
            k2, (embed_dim, dim_pos), jnp.float32, -bound_t, bound_t)
        self.type_b = jax.random.uniform(
            k3, (embed_dim,), jnp.float32, -bound_t, bound_t)
        # Pre-transposed weight for the kernel (x @ W^T + b layout).
        self.type_w_t = self.type_w.T
        # self.type_weight = nn.Parameter(torch.tensor(0.1))  (unused in forward)
        self.type_weight = jnp.float32(0.1)

    def forward(self, batch):
        # edge_attr = self.type_model(batch.edge_type)
        edge_type = batch["edge_type"]
        edge_attr = type_model_linear(edge_type, self.type_w_t, self.type_b)
        batch = dict(batch)
        batch["edge_attr"] = edge_attr
        return batch


if __name__ == "__main__":
    key = jax.random.PRNGKey(0)
    k_param, k_data, k_data2 = jax.random.split(key, 3)

    # Shapes consistent with the module: cfg.share.dim_pos -> 32,
    # cfg.share.dim_edge -> 4, embed_dim -> 32, num_edges -> 10 (not a
    # multiple of the fold factor, exercises the <=3-row pad + partial tile).
    dim_pos = 32
    dim_edge = 4
    embed_dim = 32
    num_edges = 10

    enc = SinePosEbdEdgeEncoderPallas(embed_dim, dim_edge, dim_pos, k_param)

    edge_type = jax.random.normal(k_data, (num_edges, dim_pos), jnp.float32)
    batch = {"edge_type": edge_type}

    out_batch = enc.forward(batch)
    edge_attr = jax.block_until_ready(out_batch["edge_attr"])

    # Reference check in plain JAX (same math as torch.nn.Linear).
    ref = edge_type @ enc.type_w.T + enc.type_b
    assert edge_attr.shape == (num_edges, embed_dim)
    assert jnp.allclose(edge_attr, ref, atol=1e-5, rtol=1e-5)

    # Second check: multi-step grid with a ragged last tile (tile_r=8, E=100).
    edge_type2 = jax.random.normal(k_data2, (100, dim_pos), jnp.float32)
    out2 = jax.block_until_ready(
        type_model_linear(edge_type2, enc.type_w_t, enc.type_b, tile_r=8))
    ref2 = edge_type2 @ enc.type_w.T + enc.type_b
    assert jnp.allclose(out2, ref2, atol=1e-5, rtol=1e-5)

    print("KERNEL_OK")
</pallas_src>

<mosaic_0001>
module attributes {stable_mosaic.version = 11 : i64} {
  func.func @_folded_linear_kernel(%arg0: i32, %arg1: memref<8x128xf32, #tpu.memory_space<vmem>>, %arg2: memref<128x128xf32, #tpu.memory_space<vmem>>, %arg3: memref<1x128xf32, #tpu.memory_space<vmem>>, %arg4: memref<8x128xf32, #tpu.memory_space<vmem>>) attributes {dimension_semantics = [#tpu.dimension_semantics<parallel>], iteration_bounds = array<i64: 1>, scalar_prefetch = 0 : i64, scratch_operands = 0 : i64, tpu.core_type = #tpu.core_type<tc>, window_params = [{transform_indices = @transform_0, window_bounds = array<i64: 8, 128>}, {pipeline_mode = #tpu.pipeline_mode<synchronous>, transform_indices = @transform_1, window_bounds = array<i64: 128, 128>}, {pipeline_mode = #tpu.pipeline_mode<synchronous>, transform_indices = @transform_2, window_bounds = array<i64: 1, 128>}, {transform_indices = @transform_3, window_bounds = array<i64: 8, 128>}]} {
    %c0 = arith.constant 0 : index
    %c0_0 = arith.constant 0 : index
    %0 = vector.load %arg1[%c0, %c0_0] : memref<8x128xf32, #tpu.memory_space<vmem>>, vector<8x128xf32>
    %c0_1 = arith.constant 0 : index
    %c0_2 = arith.constant 0 : index
    %1 = vector.load %arg2[%c0_1, %c0_2] : memref<128x128xf32, #tpu.memory_space<vmem>>, vector<128x128xf32>
    %cst = arith.constant dense<0.000000e+00> : vector<8x128xf32>
    %2 = tpu.matmul %0, %1, %cst {dimension_numbers = #tpu.dot_dimension_numbers<[1], [0], [0], [1], [0, 0, 1, 1], [], []>} : vector<8x128xf32>, vector<128x128xf32>, vector<8x128xf32> -> vector<8x128xf32>
    %c0_3 = arith.constant 0 : index
    %c0_4 = arith.constant 0 : index
    %3 = vector.load %arg3[%c0_3, %c0_4] : memref<1x128xf32, #tpu.memory_space<vmem>>, vector<1x128xf32>
    %4 = vector.broadcast %3 : vector<1x128xf32> to vector<8x128xf32>
    %5 = arith.addf %2, %4 : vector<8x128xf32>
    %c0_5 = arith.constant 0 : index
    %c0_6 = arith.constant 0 : index
    %6 = vector.load %arg4[%c0_5, %c0_6] : memref<8x128xf32, #tpu.memory_space<vmem>>, vector<8x128xf32>
    tpu.vector_store %arg4[%c0_5, %c0_6], %5 {strides = array<i32>} : memref<8x128xf32, #tpu.memory_space<vmem>>, vector<8x128xf32>,
    return
  }
  func.func @transform_0(%arg0: i32) -> (i32, i32) {
    %c0_i32 = arith.constant 0 : i32
    %c0_i32_0 = arith.constant 0 : i32
    return %arg0, %c0_i32 : i32, i32
  }
  func.func @transform_1(%arg0: i32) -> (i32, i32) {
    %c0_i32 = arith.constant 0 : i32
    %c0_i32_0 = arith.constant 0 : i32
    %c0_i32_1 = arith.constant 0 : i32
    return %c0_i32, %c0_i32_0 : i32, i32
  }
  func.func @transform_2(%arg0: i32) -> (i32, i32) {
    %c0_i32 = arith.constant 0 : i32
    %c0_i32_0 = arith.constant 0 : i32
    %c0_i32_1 = arith.constant 0 : i32
    return %c0_i32, %c0_i32_0 : i32, i32
  }
  func.func @transform_3(%arg0: i32) -> (i32, i32) {
    %c0_i32 = arith.constant 0 : i32
    %c0_i32_0 = arith.constant 0 : i32
    return %arg0, %c0_i32 : i32, i32
  }
}

</mosaic_0001>

<llo_original>
// kernel: tile.8
$region0: #{tile.8}
  #allocation0 [shape = 's32[1]{0}', space=sflag, size = 0x4, scoped, tag = 'scoped memory for tile.8']
  %s0 = inlined_call_operand.vmem [shape: f32[32], index: 0, kind: input, shape index: {}]
  %s1 = inlined_call_operand.vmem [shape: f32[4,32], index: 1, kind: output, shape index: {}]
  // Predicated region
  $region2: #{tile.8} parent=0 // pred_check
    _
  $region3: #{tile.8} parent=0 // pred_check_branch
    %3 = sbr.rel (0) target = $region5
  $region4: #{tile.8} parent=0 // pred_region
    _
  $region5: #{tile.8} parent=0 // pred_fallthru
    _
  %v4 = vld [vmem:[%s0] ss:$0 sm:$0xff]
  %5 = vst [vmem:[%s1] sm:$0xf] %v4

// kernel: tile.9
$region0: #{tile.9}
  %s0 = inlined_call_operand.vmem [shape: f32[4,32], index: 0, kind: input, shape index: {}]
  %s1 = inlined_call_operand.vmem [shape: f32[1,128], index: 1, kind: output, shape index: {}]
  $region1: #{tile.9} parent=0
    #allocation0 [shape = 'u8[4096]{0}', space=vmem, size = 0x1000, scoped, tag = 'scoped mem for output reshape']
    #allocation1 [shape = 'u8[4096]{0}', space=vmem, size = 0x1000, scoped, tag = 'scoped mem for input reshape']
    %s3 = sshll.u32 1, 4
    %s4 = ssub.s32 %s3, 1
    %v5 = vld [vmem:[%s0] sm:%s4]
    %6 = vst [vmem:[#allocation1] sm:%s4] %v5
    %v7 = vld [vmem:[#allocation1] sm:$0x1]
    %vm8 = vcmask 261120
    %9 = vst.msk [vmem:[#allocation0] sm:$0x1] %vm8, %v7
    %s10 = scalar_lea.vmem [#allocation1], 3
    %v11 = vld [vmem:[%s10] sm:$0x1]
    %12 = vrot.lane.b32.xlu0 %v11, 96
    %v13 = vpop.permute.xlu0 %12
    %vm14 = vcmask 1048320
    %15 = vst.msk [vmem:[#allocation0] sm:$0x1] %vm14, %v13
    %s16 = scalar_lea.vmem [#allocation1], 2
    %v17 = vld [vmem:[%s16] sm:$0x1]
    %18 = vrot.lane.b32.xlu0 %v17, 64
    %v19 = vpop.permute.xlu0 %18
    %vm20 = vcmask 785920
    %21 = vst.msk [vmem:[#allocation0] sm:$0x1] %vm20, %v19
    %s22 = scalar_lea.vmem [#allocation1], 1
    %v23 = vld [vmem:[%s22] sm:$0x1]
    %24 = vrot.lane.b32.xlu0 %v23, 32
    %v25 = vpop.permute.xlu0 %24
    %vm26 = vcmask 523520
    %27 = vst.msk [vmem:[#allocation0] sm:$0x1] %vm26, %v25
    %s29 = sshll.u32 1, 1
    %s30 = ssub.s32 %s29, 1
    %v32 = vld [vmem:[#allocation0] sm:%s30]
    %s33 = sshll.u32 1, 1
    %s34 = ssub.s32 %s33, 1
    %35 = vst [vmem:[%s1] sm:%s34] %v32

// kernel: type_model_linear.1
$region0: #{type_model_linear.1}
  #allocation0 [shape = 'u32[]', space=smem, size = 0x4, offset = 0x4, fixed_abs, tag = 'smem constant byte address 0x4 - core index']
  #allocation1 [shape = 'u32[144,128]{1,0:T(1,128)}', space=vmem, size = 0x12000, scoped, tag = 'internal scratch']
  %s0 = inlined_call_operand.vmem [shape: f32[3,128], index: 0, kind: input, shape index: {}]
  %s1 = inlined_call_operand.vmem [shape: f32[128,128], index: 1, kind: input, shape index: {}]
  %s2 = inlined_call_operand.vmem [shape: f32[1,128], index: 2, kind: input, shape index: {}]
  %s3 = inlined_call_operand.vmem [shape: f32[3,128], index: 3, kind: output, shape index: {}]
  %s4 = sld [smem:[#allocation0]]
  $region52: #{type_model_linear.1} parent=0
    _
  %s6 = ssub.s32 1, %s4
  %s7 = scalar_select 0, %s6, %s4
  $region1: #{type_model_linear.1} parent=0
    #allocation2 [shape = 'u8[4096]{0}', space=vmem, size = 0x1000, scoped, tag = 'output window, operand 0, single buffered']
    // Predicated region
    $region2: #{type_model_linear.1} parent=1 // pred_check
      _
    $region3: #{type_model_linear.1} parent=1 // pred_check_branch
      %9 = sbr.rel (0) target = $region5
    $region4: #{type_model_linear.1} parent=1 // pred_region
      _
    $region5: #{type_model_linear.1} parent=1 // pred_fallthru
      _
    // Predicated region
    $region6: #{type_model_linear.1} parent=1 // pred_check
      _
    $region7: #{type_model_linear.1} parent=1 // pred_check_branch
      %11 = sbr.rel (0) target = $region9
    $region8: #{type_model_linear.1} parent=1 // pred_region
      _
    $region9: #{type_model_linear.1} parent=1 // pred_fallthru
      _
    // Predicated region
    $region10: #{type_model_linear.1} parent=1 // pred_check
      _
    $region11: #{type_model_linear.1} parent=1 // pred_check_branch
      %13 = sbr.rel (0) target = $region13
    $region12: #{type_model_linear.1} parent=1 // pred_region
      _
    $region13: #{type_model_linear.1} parent=1 // pred_fallthru
      _
    %v14 = vld [vmem:[%s0] sm:$0xff]
    %v15 = vld [vmem:[%s1] sm:$0xff]
    %v16 = vld [vmem:[%s1 + $0x8] sm:$0xff]
    %v17 = vld [vmem:[%s1 + $0x10] sm:$0xff]
    %v18 = vld [vmem:[%s1 + $0x18] sm:$0xff]
    %v19 = vld [vmem:[%s1 + $0x20] sm:$0xff]
    %v20 = vld [vmem:[%s1 + $0x28] sm:$0xff]
    %v21 = vld [vmem:[%s1 + $0x30] sm:$0xff]
    %v22 = vld [vmem:[%s1 + $0x38] sm:$0xff]
    %v23 = vld [vmem:[%s1 + $0x40] sm:$0xff]
    %v24 = vld [vmem:[%s1 + $0x48] sm:$0xff]
    %v25 = vld [vmem:[%s1 + $0x50] sm:$0xff]
    %v26 = vld [vmem:[%s1 + $0x58] sm:$0xff]
    %v27 = vld [vmem:[%s1 + $0x60] sm:$0xff]
    %v28 = vld [vmem:[%s1 + $0x68] sm:$0xff]
    %v29 = vld [vmem:[%s1 + $0x70] sm:$0xff]
    %v30 = vld [vmem:[%s1 + $0x78] sm:$0xff]
    %v31 = vld [vmem:[%s2] sm:$0x1]
    %v33 = vlaneseq
    %v34 = vshrl.u32 %v33, 7
    %v35 = vsub.s32 0, %v34
    %v36 = vrot.slane %v31, %v35
    %38 = vmatprep.subr.mxu0 0.0
    %39 = vmatpush1.msra.mxu0 %v30
    %40 = vmatprep.subr.mxu0 0.0
    %41 = vmatpush1.msra.mxu0 %v29
    %42 = vmatprep.subr.mxu0 0.0
    %43 = vmatpush1.msra.mxu0 %v28
    %44 = vmatprep.subr.mxu0 0.0
    %45 = vmatpush1.msra.mxu0 %v27
    %46 = vmatprep.subr.mxu0 0.0
    %47 = vmatpush1.msra.mxu0 %v26
    %48 = vmatprep.subr.mxu0 0.0
    %49 = vmatpush1.msra.mxu0 %v25
    %50 = vmatprep.subr.mxu0 0.0
    %51 = vmatpush1.msra.mxu0 %v24
    %52 = vmatprep.subr.mxu0 0.0
    %53 = vmatpush1.msra.mxu0 %v23
    %54 = vmatprep.subr.mxu0 0.0
    %55 = vmatpush1.msra.mxu0 %v22
    %56 = vmatprep.subr.mxu0 0.0
    %57 = vmatpush1.msra.mxu0 %v21
    %58 = vmatprep.subr.mxu0 0.0
    %59 = vmatpush1.msra.mxu0 %v20
    %60 = vmatprep.subr.mxu0 0.0
    %61 = vmatpush1.msra.mxu0 %v19
    %62 = vmatprep.subr.mxu0 0.0
    %63 = vmatpush1.msra.mxu0 %v18
    %64 = vmatprep.subr.mxu0 0.0
    %65 = vmatpush1.msra.mxu0 %v17
    %66 = vmatprep.subr.mxu0 0.0
    %67 = vmatpush1.msra.mxu0 %v16
    %68 = vmatprep.subr.mxu0 0.0
    %69 = vmatpush1.msra.mxu0 %v15
    %70 = vmatprep.subr.mxu0 0.0
    %71 = vmatpush2.msra.mxu0 0.0
    %72 = vmatprep.subr.mxu0 0.0
    %73 = vmatpush2.msra.mxu0 0.0
    %74 = vmatprep.subr.mxu0 0.0
    %75 = vmatpush2.msra.mxu0 0.0
    %76 = vmatprep.subr.mxu0 0.0
    %77 = vmatpush2.msra.mxu0 0.0
    %78 = vmatprep.subr.mxu0 0.0
    %79 = vmatpush2.msra.mxu0 0.0
    %80 = vmatprep.subr.mxu0 0.0
    %81 = vmatpush2.msra.mxu0 0.0
    %82 = vmatprep.subr.mxu0 0.0
    %83 = vmatpush2.msra.mxu0 0.0
    %84 = vmatprep.subr.mxu0 0.0
    %85 = vmatpush2.msra.mxu0 0.0
    %86 = vmatprep.subr.mxu0 0.0
    %87 = vmatpush2.msra.mxu0 0.0
    %88 = vmatprep.subr.mxu0 0.0
    %89 = vmatpush2.msra.mxu0 0.0
    %90 = vmatprep.subr.mxu0 0.0
    %91 = vmatpush2.msra.mxu0 0.0
    %92 = vmatprep.subr.mxu0 0.0
    %93 = vmatpush2.msra.mxu0 0.0
    %94 = vmatprep.subr.mxu0 0.0
    %95 = vmatpush2.msra.mxu0 0.0
    %96 = vmatprep.subr.mxu0 0.0
    %97 = vmatpush2.msra.mxu0 0.0
    %98 = vmatprep.subr.mxu0 0.0
    %99 = vmatpush2.msra.mxu0 0.0
    %100 = vmatprep.subr.mxu0 0.0
    %101 = vmatpush2.msra.mxu0 0.0
    %102 = vmatprep.mubr.f32.mxu0 0.0
    %103 = vmatmul.mubr.f32.gmra.mxu0 %v14
    %v104 = vpop.f32.mrf.mxu0
    %v105 = vadd.f32 %v36, %v104
    %v106 = vpop.f32.mrf.mxu0
    %107 = vdwg.mxu0
    %108 = vst [vmem:[#allocation2] sm:$0xff] %v105
    // Predicated region
    $region14: #{type_model_linear.1} parent=1 // pred_check
      _
    $region15: #{type_model_linear.1} parent=1 // pred_check_branch
      %110 = sbr.rel (0) target = $region17
    $region16: #{type_model_linear.1} parent=1 // pred_region
      // Predicated region
      $region18: #{type_model_linear.1} parent=16 // pred_check
        _
      $region19: #{type_model_linear.1} parent=16 // pred_check_branch
        %112 = sbr.rel (0) target = $region21
      $region20: #{type_model_linear.1} parent=16 // pred_region
        // Predicated region
        $region22: #{type_model_linear.1} parent=20 // pred_check
          _
        $region23: #{type_model_linear.1} parent=20 // pred_check_branch
          %114 = sbr.rel target = $region25
        $region24: #{type_model_linear.1} parent=20 // pred_region
          // Predicated region
          $region37: #{type_model_linear.1} parent=24 // pred_check
            _
          $region38: #{type_model_linear.1} parent=24 // pred_check_branch
            %130 = sbr.rel (0) target = $region40
          $region39: #{type_model_linear.1} parent=24 // pred_region
            %s132 = ssub.s32 16, 1
            loop: start=0, step=1, limit=1
            $region41: #{type_model_linear.1} parent=39 // loop_pre_header
              _
            $region42: #{type_model_linear.1} parent=39 // loop_header
              %s134 = sphi 0, %s138
              %p135 = scmp.ge.s32.totalorder %s134, 1
              %s139 = sphi [#allocation2], [#allocation2]
              %s140 = sphi %s3, %s3
            $region43: #{type_model_linear.1} parent=39 // loop_header_branch
              %137 = sbr.rel (%p135) target = $region47
            $region44: #{type_model_linear.1} parent=39 // loop_body
              %v141 = vld [vmem:[%s139] sm:%s132]
              %142 = vst [vmem:[%s140] sm:%s132] %v141
            $region45: #{type_model_linear.1} parent=39 // loop_footer
              %s138 = sadd.s32 1, %s134
            $region46: #{type_model_linear.1} parent=39 // loop_footer_branch
              %133 = sbr.rel target = $region42
            $region47: #{type_model_linear.1} parent=39 // loop_exit
              _
          $region40: #{type_model_linear.1} parent=24 // pred_fallthru
            _
        $region25: #{type_model_linear.1} parent=20 // pred_fallthru
          _
        // Predicated region
        $region26: #{type_model_linear.1} parent=20 // pred_check
          _
        $region27: #{type_model_linear.1} parent=20 // pred_check_branch
          %116 = sbr.rel (0) target = $region29
        $region28: #{type_model_linear.1} parent=20 // pred_region
          %s118 = ssub.s32 16, 1
          loop: start=0, step=1, limit=1
          $region30: #{type_model_linear.1} parent=28 // loop_pre_header
            _
          $region31: #{type_model_linear.1} parent=28 // loop_header
            %s120 = sphi 0, %s124
            %p121 = scmp.ge.s32.totalorder %s120, 1
            %s125 = sphi [#allocation2], [#allocation2]
            %s126 = sphi %s3, %s3
          $region32: #{type_model_linear.1} parent=28 // loop_header_branch
            %123 = sbr.rel (%p121) target = $region36
          $region33: #{type_model_linear.1} parent=28 // loop_body
            %v127 = vld [vmem:[%s125] sm:%s118]
            %128 = vst [vmem:[%s126] sm:%s118] %v127
          $region34: #{type_model_linear.1} parent=28 // loop_footer
            %s124 = sadd.s32 1, %s120
          $region35: #{type_model_linear.1} parent=28 // loop_footer_branch
            %119 = sbr.rel target = $region31
          $region36: #{type_model_linear.1} parent=28 // loop_exit
            _
        $region29: #{type_model_linear.1} parent=20 // pred_fallthru
          _
      $region21: #{type_model_linear.1} parent=16 // pred_fallthru
        _
      %143 = vnop
    $region17: #{type_model_linear.1} parent=1 // pred_fallthru
      _
    // Predicated region
    $region48: #{type_model_linear.1} parent=1 // pred_check
      _
    $region49: #{type_model_linear.1} parent=1 // pred_check_branch
      %145 = sbr.rel (0) target = $region51
    $region50: #{type_model_linear.1} parent=1 // pred_region
      _
    $region51: #{type_model_linear.1} parent=1 // pred_fallthru
      _

</llo_original>
